<compile_context>
chip_gen: v6e
topology: v6e:2x2x1
jax: 0.10.0
libtpu: 0.0.40
codegen_flags: <defaults>
</compile_context>

<pallas_src>
import jax
import jax.numpy as jnp
from jax.experimental import pallas as pl
from jax.experimental.pallas import tpu as pltpu

KERNEL_SIZE = 3


def conv1d_kernel(w_ref, b_ref, x_ref, o_ref):
    # w_ref: SMEM (3,) f32     b_ref: SMEM (1,) f32
    # x_ref: VMEM (tn, L)      o_ref: VMEM (tn, L-2)
    x = x_ref[...].astype(jnp.float32)
    l_out = o_ref.shape[-1]
    acc = b_ref[0] + w_ref[0] * x[:, 0:l_out]
    for k in range(1, KERNEL_SIZE):
        acc = acc + w_ref[k] * x[:, k:k + l_out]
    o_ref[...] = acc.astype(o_ref.dtype)


def _round_up(v, m):
    return (v + m - 1) // m * m


def _cdiv(a, b):
    return (a + b - 1) // b


def toy_model_forward(x, weight, bias):
    """x: (N, 1, L); weight: (1, 1, 3); bias: (1,). Returns (N, 1, L-2)."""
    n, c, l = x.shape
    assert c == 1
    l_out = l - KERNEL_SIZE + 1
    assert l_out >= 1

    x2 = x.reshape(n, l)

    # Sublane multiple for this dtype: 8 for 4-byte, 16 for 2-byte, 32 for 1-byte.
    itemsize = x.dtype.itemsize
    sub = max(8, 32 // max(1, itemsize))

    # Balanced batch tile: ~4 MiB input per block, no large round_up(N, tn) overshoot.
    n8 = _round_up(n, sub)
    row_bytes = max(1, l * itemsize)
    tn_cap = max(sub, (4 * 1024 * 1024 // row_bytes) // sub * sub)
    num_tiles = max(1, _cdiv(n8, tn_cap))
    tn = _round_up(_cdiv(n8, num_tiles), sub)
    # Prefer >=2 grid steps so the "parallel" axis can shard across v7x's two TCs.
    if _cdiv(n8, tn) < 2 and n8 >= 2 * sub:
        tn = _round_up(_cdiv(n8, 2), sub)
    grid_n = _cdiv(n8, tn)
    n_pad = grid_n * tn

    if n_pad != n:
        x2 = jnp.zeros((n_pad, l), x.dtype).at[:n, :].set(x2)

    w1 = weight.reshape(KERNEL_SIZE).astype(jnp.float32)
    b1 = bias.reshape(1).astype(jnp.float32)

    out = pl.pallas_call(
        conv1d_kernel,
        out_shape=jax.ShapeDtypeStruct((n_pad, l_out), x.dtype),
        grid=(grid_n,),
        in_specs=[
            pl.BlockSpec(memory_space=pltpu.MemorySpace.SMEM),   # conv weight scalars
            pl.BlockSpec(memory_space=pltpu.MemorySpace.SMEM),   # bias scalar
            pl.BlockSpec((tn, l), lambda i: (i, 0)),             # x batch tile (full L)
        ],
        out_specs=pl.BlockSpec((tn, l_out), lambda i: (i, 0)),   # full l_out, lane-masked tail
        compiler_params=pltpu.CompilerParams(
            dimension_semantics=("parallel",),
            vmem_limit_bytes=48 * 1024 * 1024,
        ),
    )(w1, b1, x2)

    if n_pad != n:
        out = out[:n]
    return out.reshape(n, 1, l_out)


def init_params(key):
    # Deterministic init mimicking torch.nn.Conv1d default:
    # uniform(-1/sqrt(fan_in), 1/sqrt(fan_in)), fan_in = C_in * kernel_size = 3.
    kw, kb = jax.random.split(key)
    bound = 1.0 / jnp.sqrt(jnp.float32(KERNEL_SIZE))
    weight = jax.random.uniform(kw, (1, 1, KERNEL_SIZE), jnp.float32, -bound, bound)
    bias = jax.random.uniform(kb, (1,), jnp.float32, -bound, bound)
    return weight, bias


if __name__ == "__main__":
    key = jax.random.PRNGKey(0)
    k_x, k_p = jax.random.split(key)

    N, C, L = 2, 1, 16
    x = jax.random.normal(k_x, (N, C, L), jnp.float32)
    weight, bias = init_params(k_p)

    y = toy_model_forward(x, weight, bias)
    y = jax.block_until_ready(y)

    # Cross-check against a plain-JAX reference conv (valid padding, stride 1).
    L_OUT = L - KERNEL_SIZE + 1
    ref = jnp.stack(
        [weight[0, 0, k] * x[:, 0, k:k + L_OUT] for k in range(KERNEL_SIZE)],
        axis=0,
    ).sum(0) + bias[0]
    ref = ref[:, None, :]

    assert y.shape == (N, 1, L_OUT)
    assert jnp.allclose(y, ref, atol=1e-5, rtol=1e-5)

    print("KERNEL_OK")
</pallas_src>

<mosaic_0001>
module attributes {stable_mosaic.version = 11 : i64} {
  func.func @conv1d_kernel(%arg0: i32, %arg1: memref<3xf32, #tpu.memory_space<smem>>, %arg2: memref<1xf32, #tpu.memory_space<smem>>, %arg3: memref<8x16xf32, #tpu.memory_space<vmem>>, %arg4: memref<8x14xf32, #tpu.memory_space<vmem>>) attributes {dimension_semantics = [#tpu.dimension_semantics<parallel>], iteration_bounds = array<i64: 1>, scalar_prefetch = 0 : i64, scratch_operands = 0 : i64, tpu.core_type = #tpu.core_type<tc>, window_params = [{transform_indices = @transform_0, window_bounds = array<i64: 3>}, {transform_indices = @transform_1, window_bounds = array<i64: 1>}, {transform_indices = @transform_2, window_bounds = array<i64: 8, 16>}, {transform_indices = @transform_3, window_bounds = array<i64: 8, 14>}]} {
    %c0 = arith.constant 0 : index
    %c0_0 = arith.constant 0 : index
    %0 = vector.load %arg3[%c0, %c0_0] : memref<8x16xf32, #tpu.memory_space<vmem>>, vector<8x16xf32>
    %c0_1 = arith.constant 0 : index
    %1 = memref.load %arg2[%c0_1] : memref<1xf32, #tpu.memory_space<smem>>
    %c0_2 = arith.constant 0 : index
    %2 = memref.load %arg1[%c0_2] : memref<3xf32, #tpu.memory_space<smem>>
    %3 = vector.extract_strided_slice %0 {offsets = [0, 0], sizes = [8, 14], strides = [1, 1]} : vector<8x16xf32> to vector<8x14xf32>
    %4 = vector.broadcast %2 : f32 to vector<8x14xf32>
    %5 = arith.mulf %4, %3 : vector<8x14xf32>
    %6 = vector.broadcast %1 : f32 to vector<8x14xf32>
    %7 = arith.addf %6, %5 : vector<8x14xf32>
    %c1 = arith.constant 1 : index
    %8 = memref.load %arg1[%c1] : memref<3xf32, #tpu.memory_space<smem>>
    %9 = vector.extract_strided_slice %0 {offsets = [0, 1], sizes = [8, 14], strides = [1, 1]} : vector<8x16xf32> to vector<8x14xf32>
    %10 = vector.broadcast %8 : f32 to vector<8x14xf32>
    %11 = arith.mulf %10, %9 : vector<8x14xf32>
    %12 = arith.addf %7, %11 : vector<8x14xf32>
    %c2 = arith.constant 2 : index
    %13 = memref.load %arg1[%c2] : memref<3xf32, #tpu.memory_space<smem>>
    %14 = vector.extract_strided_slice %0 {offsets = [0, 2], sizes = [8, 14], strides = [1, 1]} : vector<8x16xf32> to vector<8x14xf32>
    %15 = vector.broadcast %13 : f32 to vector<8x14xf32>
    %16 = arith.mulf %15, %14 : vector<8x14xf32>
    %17 = arith.addf %12, %16 : vector<8x14xf32>
    %c0_3 = arith.constant 0 : index
    %c0_4 = arith.constant 0 : index
    %18 = vector.load %arg4[%c0_3, %c0_4] : memref<8x14xf32, #tpu.memory_space<vmem>>, vector<8x14xf32>
    tpu.vector_store %arg4[%c0_3, %c0_4], %17 {strides = array<i32>} : memref<8x14xf32, #tpu.memory_space<vmem>>, vector<8x14xf32>,
    return
  }
  func.func @transform_0(%arg0: i32) -> i32 {
    %c0_i32 = arith.constant 0 : i32
    %c0_i32_0 = arith.constant 0 : i32
    return %c0_i32 : i32
  }
  func.func @transform_1(%arg0: i32) -> i32 {
    %c0_i32 = arith.constant 0 : i32
    %c0_i32_0 = arith.constant 0 : i32
    return %c0_i32 : i32
  }
  func.func @transform_2(%arg0: i32) -> (i32, i32) {
    %c0_i32 = arith.constant 0 : i32
    %c0_i32_0 = arith.constant 0 : i32
    return %arg0, %c0_i32 : i32, i32
  }
  func.func @transform_3(%arg0: i32) -> (i32, i32) {
    %c0_i32 = arith.constant 0 : i32
    %c0_i32_0 = arith.constant 0 : i32
    return %arg0, %c0_i32 : i32, i32
  }
}

</mosaic_0001>

<llo_original>
// kernel: tpu_custom_call.1
$region0: #{tpu_custom_call.1}
  #allocation0 [shape = 'u32[]', space=smem, size = 0x4, offset = 0x4, fixed_abs, tag = 'smem constant byte address 0x4 - core index']
  #allocation1 [shape = 'u32[144,128]{1,0:T(1,128)}', space=vmem, size = 0x12000, scoped, tag = 'internal scratch']
  #allocation2 [shape = 'f32[1]{0:T(128)S(6)}', space=smem, size = 0x200, scoped, tag = 'scoped memory for tpu_custom_call.1']
  %s0 = inlined_call_operand.vmem [shape: f32[3], index: 0, kind: input, shape index: {}]
  %s1 = inlined_call_operand.<no memory space> [shape: f32[1], index: 1, kind: input, shape index: {}]
  %s2 = inlined_call_operand.hbm [shape: f32[8,16], index: 2, kind: input, shape index: {}]
  %s3 = inlined_call_operand.hbm [shape: f32[8,14], index: 3, kind: output, shape index: {}]
  %s4 = sld [smem:[#allocation0]]
  $region30: #{tpu_custom_call.1} parent=0
    _
  %s6 = ssub.s32 1, %s4
  %s7 = scalar_select 0, %s6, %s4
  %8 = sst [smem:[#allocation2]] %s1
  $region1: #{tpu_custom_call.1} parent=0
    #allocation3 [shape = 'u8[512]{0}', space=smem, size = 0x200, scoped, tag = 'input window, operand 0, single buffered']
    #allocation4 [shape = 's32[1]{0}', space=sflag, size = 0x4, scoped, tag = 'scoped memory for tpu_custom_call.1']
    #allocation5 [shape = 's32[1]{0}', space=sflag, size = 0x4, scoped, tag = 'scoped memory for tpu_custom_call.1']
    #allocation6 [shape = 's32[1]{0}', space=sflag, size = 0x4, scoped, tag = 'scoped memory for tpu_custom_call.1']
    #allocation7 [shape = 'u8[4096]{0}', space=vmem, size = 0x1000, scoped, tag = 'input window, operand 2, single buffered']
    #allocation8 [shape = 'u8[4096]{0}', space=vmem, size = 0x1000, scoped, tag = 'output window, operand 0, single buffered']
    %9 = vsyncpa [#allocation6], 0
    %10 = vsyncpa [#allocation4], 0
    %11 = vsyncpa [#allocation5], 0
    // Predicated region
    $region2: #{tpu_custom_call.1} parent=1 // pred_check
      _
    $region3: #{tpu_custom_call.1} parent=1 // pred_check_branch
      %13 = sbr.rel (0) target = $region5
    $region4: #{tpu_custom_call.1} parent=1 // pred_region
      %s15 = ssub.s32 16, 16
      %16 = vsyncadd [#allocation6], %s15
      %s18 = sshll.u32 %s0, 4
      %s19 = int_to_ptr.vmem [resolvable:$true] %s18
      %21 = dma.vmem_to_smem %s19, 16, [#allocation3], [#allocation6]
    $region5: #{tpu_custom_call.1} parent=1 // pred_fallthru
      _
    // Predicated region
    $region6: #{tpu_custom_call.1} parent=1 // pred_check
      _
    $region7: #{tpu_custom_call.1} parent=1 // pred_check_branch
      %23 = sbr.rel (0) target = $region9
    $region8: #{tpu_custom_call.1} parent=1 // pred_region
      _
    $region9: #{tpu_custom_call.1} parent=1 // pred_fallthru
      _
    // Predicated region
    $region10: #{tpu_custom_call.1} parent=1 // pred_check
      _
    $region11: #{tpu_custom_call.1} parent=1 // pred_check_branch
      %25 = sbr.rel (0) target = $region13
    $region12: #{tpu_custom_call.1} parent=1 // pred_region
      %s27 = ssub.s32 128, 128
      %28 = vsyncadd [#allocation4], %s27
      %s30 = sshll.u32 [#allocation7], 4
      %s31 = int_to_ptr.vmem [resolvable:$true] %s30
      %33 = dma.hbm_to_vmem [thread:$0]  %s2, 128, %s31, [#allocation4]
    $region13: #{tpu_custom_call.1} parent=1 // pred_fallthru
      _
    // Predicated region
    $region14: #{tpu_custom_call.1} parent=1 // pred_check
      _
    $region15: #{tpu_custom_call.1} parent=1 // pred_check_branch
      %35 = sbr.rel (0) target = $region17
    $region16: #{tpu_custom_call.1} parent=1 // pred_region
      %36 = dma.done [#allocation6], 16
    $region17: #{tpu_custom_call.1} parent=1 // pred_fallthru
      _
    // Predicated region
    $region18: #{tpu_custom_call.1} parent=1 // pred_check
      _
    $region19: #{tpu_custom_call.1} parent=1 // pred_check_branch
      %38 = sbr.rel (0) target = $region21
    $region20: #{tpu_custom_call.1} parent=1 // pred_region
      %39 = dma.done [#allocation4], 128
    $region21: #{tpu_custom_call.1} parent=1 // pred_fallthru
      _
    %40 = sfence
    %v41 = vld [vmem:[#allocation7] sm:$0xff]
    %s42 = sld [smem:[#allocation2]]
    %s43 = sld [smem:[#allocation3]]
    %v44 = vstv %s43
    %v45 = vmul.f32 %v44, %v41
    %v46 = vstv %s42
    %v47 = vadd.f32 %v46, %v45
    %s48 = sld [smem:[#allocation3 + $0x1]]
    %v49 = vstv %s48
    %v50 = vmul.f32 %v49, %v41
    %52 = vrot.lane.b32.xlu0 %v50, 127
    %v53 = vpop.permute.xlu0 %52
    %v55 = vadd.f32 %v47, %v53
    %s56 = sld [smem:[#allocation3 + $0x2]]
    %v57 = vstv %s56
    %v58 = vmul.f32 %v57, %v41
    %60 = vrot.lane.b32.xlu0 %v58, 126
    %v61 = vpop.permute.xlu0 %60
    %v63 = vadd.f32 %v55, %v61
    %vm64 = vcmask 113664
    %65 = vst.msk [vmem:[#allocation8] sm:$0xff] %vm64, %v63
    // Predicated region
    $region22: #{tpu_custom_call.1} parent=1 // pred_check
      _
    $region23: #{tpu_custom_call.1} parent=1 // pred_check_branch
      %67 = sbr.rel (0) target = $region25
    $region24: #{tpu_custom_call.1} parent=1 // pred_region
      %s69 = ssub.s32 128, 128
      %70 = vsyncadd [#allocation5], %s69
      %s72 = sshll.u32 [#allocation8], 4
      %s73 = int_to_ptr.vmem [resolvable:$true] %s72
      %75 = dma.vmem_to_hbm [thread:$0]  %s73, 128, %s3, [#allocation5]
    $region25: #{tpu_custom_call.1} parent=1 // pred_fallthru
      _
    // Predicated region
    $region26: #{tpu_custom_call.1} parent=1 // pred_check
      _
    $region27: #{tpu_custom_call.1} parent=1 // pred_check_branch
      %77 = sbr.rel (0) target = $region29
    $region28: #{tpu_custom_call.1} parent=1 // pred_region
      %78 = dma.done [#allocation5], 128
    $region29: #{tpu_custom_call.1} parent=1 // pred_fallthru
      _
    %79 = vsyncpa [#allocation4], 1
    %80 = vsyncpa [#allocation5], 1
    %81 = vsyncpa [#allocation6], 1

</llo_original>
